<compile_context>
chip_gen: v7x
topology: tpu7x:2x2x1
jax: 0.10.0
libtpu: 0.0.40
codegen_flags: <defaults>
</compile_context>

<pallas_src>
from functools import partial

import jax
import jax.numpy as jnp
from jax.experimental import pallas as pl
from jax.experimental.pallas import tpu as pltpu


_NEG_BIG = -1e30                    # finite mask sentinel (f32-safe through leaky_relu/exp)
_VMEM_LIMIT = 32 * 1024 * 1024      # explicit scoped-VMEM budget, safe on v5e/v6e/v7x


def _round_up(a, m):
    return ((a + m - 1) // m) * m


def _cparams(*sems):
    return pltpu.CompilerParams(dimension_semantics=sems,
                                vmem_limit_bytes=_VMEM_LIMIT)


def _attn_tiles(n):
    """Padded node count + (dst, src) tile sizes for the attention kernel."""
    if n <= 128:
        np_ = _round_up(n, 8)
        return np_, np_, np_
    np_ = _round_up(n, 128)
    return np_, 128, 128


# ----------------------------------------------------------------------------
# Row-tiled linear kernel: y = x @ w + b (optional fused ReLU)
# ----------------------------------------------------------------------------
def _linear_kernel(x_ref, w_ref, b_ref, o_ref, *, relu):
    y = jnp.dot(x_ref[...], w_ref[...], preferred_element_type=jnp.float32)
    y = y + b_ref[...]
    if relu:
        y = jnp.maximum(y, 0.0)
    o_ref[...] = y


def pallas_linear(x, w, b, relu=False, block_rows=512):
    """x:[M,K] @ w:[K,N] + b:[1,N], tiled over row blocks."""
    M, K = x.shape
    N = w.shape[1]
    TM = min(block_rows, _round_up(M, 8))
    Mp = _round_up(M, TM)
    if Mp != M:
        x = jnp.pad(x, ((0, Mp - M), (0, 0)))
    out = pl.pallas_call(
        partial(_linear_kernel, relu=relu),
        out_shape=jax.ShapeDtypeStruct((Mp, N), jnp.float32),
        grid=(Mp // TM,),
        in_specs=[
            pl.BlockSpec((TM, K), lambda i: (i, 0)),
            pl.BlockSpec((K, N), lambda i: (0, 0)),
            pl.BlockSpec((1, N), lambda i: (0, 0)),
        ],
        out_specs=pl.BlockSpec((TM, N), lambda i: (i, 0)),
        compiler_params=_cparams("parallel"),
    )(x, w, b)
    return out[:M] if Mp != M else out


# ----------------------------------------------------------------------------
# GAT attention: online softmax over src tiles, fused bias/BN/ReLU/residual
# ----------------------------------------------------------------------------
def _gat_attn_kernel(elog_ref, v_ref, xres_ref, bias_ref, scale_ref, shift_ref,
                     o_ref, m_ref, l_ref, acc_ref, *, n_heads):
    ki = pl.program_id(1)

    @pl.when(ki == 0)
    def _():
        m_ref[...] = jnp.full(m_ref.shape, _NEG_BIG, jnp.float32)
        l_ref[...] = jnp.zeros(l_ref.shape, jnp.float32)
        acc_ref[...] = jnp.zeros(acc_ref.shape, jnp.float32)

    # elog holds a_dst + a_src + a_edge for real edges, _NEG_BIG elsewhere.
    s = elog_ref[...]                                        # [H, TQ, TK]
    s = jnp.where(s >= 0.0, s, 0.2 * s)                      # leaky_relu(0.2)
    m_prev = m_ref[...]
    m_new = jnp.maximum(m_prev, jnp.max(s, axis=-1, keepdims=True))
    alpha = jnp.exp(m_prev - m_new)                          # [H, TQ, 1]
    p = jnp.exp(s - m_new)                                   # [H, TQ, TK]
    l_ref[...] = alpha * l_ref[...] + jnp.sum(p, axis=-1, keepdims=True)
    acc_ref[...] = alpha * acc_ref[...] + jnp.einsum(
        "hqk,hkc->hqc", p, v_ref[...], preferred_element_type=jnp.float32)
    m_ref[...] = m_new

    @pl.when(ki == pl.num_programs(1) - 1)
    def _():
        inv_l = pl.reciprocal(jnp.maximum(l_ref[...], 1e-20), approx=True)  # [H,TQ,1]
        # heads fused onto the lane axis -> lane-dense [TQ, H*C] output store
        y = jnp.concatenate([acc_ref[h] * inv_l[h] for h in range(n_heads)], axis=-1)
        y = (y + bias_ref[...]) * scale_ref[...] + shift_ref[...]   # +bias, eval BN
        y = jnp.maximum(y, 0.0)                                     # ReLU
        o_ref[...] = (xres_ref[...] + y) * 0.5                      # residual / 2


def pallas_gat_attention(elog, v_h, x_res, bias, scale, shift, *, tq, tk):
    """elog:[H,Np,Np], v_h:[H,Np,C], x_res:[Np,D], bias/scale/shift:[1,D] -> [Np,D]."""
    H, Np, _ = elog.shape
    C = v_h.shape[-1]
    D = H * C
    return pl.pallas_call(
        partial(_gat_attn_kernel, n_heads=H),
        out_shape=jax.ShapeDtypeStruct((Np, D), jnp.float32),
        grid=(Np // tq, Np // tk),
        in_specs=[
            pl.BlockSpec((H, tq, tk), lambda qi, ki: (0, qi, ki)),
            pl.BlockSpec((H, tk, C), lambda qi, ki: (0, ki, 0)),
            pl.BlockSpec((tq, D), lambda qi, ki: (qi, 0)),
            pl.BlockSpec((1, D), lambda qi, ki: (0, 0)),
            pl.BlockSpec((1, D), lambda qi, ki: (0, 0)),
            pl.BlockSpec((1, D), lambda qi, ki: (0, 0)),
        ],
        out_specs=pl.BlockSpec((tq, D), lambda qi, ki: (qi, 0)),
        scratch_shapes=[
            pltpu.VMEM((H, tq, 1), jnp.float32),    # running max
            pltpu.VMEM((H, tq, 1), jnp.float32),    # running sum
            pltpu.VMEM((H, tq, C), jnp.float32),    # running weighted values
        ],
        compiler_params=_cparams("parallel", "arbitrary"),
    )(elog, v_h, x_res, bias, scale, shift)


# ----------------------------------------------------------------------------
# Fused 3-layer MLP head (widths padded to 128, intermediates stay on-chip)
# ----------------------------------------------------------------------------
def _mlp_head_kernel(x_ref, w1_ref, b1_ref, w2_ref, b2_ref, w3_ref, b3_ref, o_ref):
    h = jnp.dot(x_ref[...], w1_ref[...], preferred_element_type=jnp.float32) + b1_ref[...]
    h = jnp.maximum(h, 0.0)
    h = jnp.dot(h, w2_ref[...], preferred_element_type=jnp.float32) + b2_ref[...]
    h = jnp.maximum(h, 0.0)
    o_ref[...] = jnp.dot(h, w3_ref[...], preferred_element_type=jnp.float32) + b3_ref[...]


def pallas_mlp_head(x, w1, b1, w2, b2, w3, b3, block_rows=512):
    M, K = x.shape
    n_classes = w3.shape[1]
    H1 = _round_up(w1.shape[1], 128)
    H2 = _round_up(w2.shape[1], 128)
    OC = _round_up(n_classes, 128)
    w1p = jnp.pad(w1, ((0, 0), (0, H1 - w1.shape[1])))
    b1p = jnp.pad(b1, ((0, 0), (0, H1 - b1.shape[1])))
    w2p = jnp.pad(w2, ((0, H1 - w2.shape[0]), (0, H2 - w2.shape[1])))
    b2p = jnp.pad(b2, ((0, 0), (0, H2 - b2.shape[1])))
    w3p = jnp.pad(w3, ((0, H2 - w3.shape[0]), (0, OC - w3.shape[1])))
    b3p = jnp.pad(b3, ((0, 0), (0, OC - b3.shape[1])))

    TM = min(block_rows, _round_up(M, 8))
    Mp = _round_up(M, TM)
    xq = jnp.pad(x, ((0, Mp - M), (0, 0))) if Mp != M else x
    out = pl.pallas_call(
        _mlp_head_kernel,
        out_shape=jax.ShapeDtypeStruct((Mp, OC), jnp.float32),
        grid=(Mp // TM,),
        in_specs=[
            pl.BlockSpec((TM, K), lambda i: (i, 0)),
            pl.BlockSpec((K, H1), lambda i: (0, 0)),
            pl.BlockSpec((1, H1), lambda i: (0, 0)),
            pl.BlockSpec((H1, H2), lambda i: (0, 0)),
            pl.BlockSpec((1, H2), lambda i: (0, 0)),
            pl.BlockSpec((H2, OC), lambda i: (0, 0)),
            pl.BlockSpec((1, OC), lambda i: (0, 0)),
        ],
        out_specs=pl.BlockSpec((TM, OC), lambda i: (i, 0)),
        compiler_params=_cparams("parallel"),
    )(xq, w1p, b1p, w2p, b2p, w3p, b3p)
    return out[:M, :n_classes]


# ----------------------------------------------------------------------------
# GATConv layer (PyG semantics) + fused residual/BN/ReLU epilogue
# ----------------------------------------------------------------------------
def gat_conv(x, edge_index, e_attr, p, n_heads, head_dim, bn_scale, bn_shift):
    N = x.shape[0]
    H, C = n_heads, head_dim
    D = H * C
    src, dst = edge_index[0], edge_index[1]

    # add_self_loops with fill_value='mean': self-loop edge_attr = mean of incoming edge_attr
    sums = jnp.zeros((N, D), jnp.float32).at[dst].add(e_attr)
    counts = jnp.zeros((N,), jnp.float32).at[dst].add(1.0)
    loop_attr = sums / jnp.maximum(counts, 1.0)[:, None]
    loop_idx = jnp.arange(N, dtype=src.dtype)
    src_f = jnp.concatenate([src, loop_idx])
    dst_f = jnp.concatenate([dst, loop_idx])
    eattr_f = jnp.concatenate([e_attr, loop_attr], axis=0)

    # fold the per-head attention-coefficient reductions into the projection matmuls
    eye = jnp.eye(H, dtype=jnp.float32)

    def head_matrix(att):                       # [1,H,C] -> [D,H] block diagonal
        return (att[0][:, :, None] * eye[:, None, :]).reshape(D, H)

    w_node = jnp.concatenate(
        [p["lin_w"],
         p["lin_w"] @ head_matrix(p["att_src"]),
         p["lin_w"] @ head_matrix(p["att_dst"])], axis=1)              # [D, D+2H]
    x_ext = pallas_linear(x, w_node, jnp.zeros((1, D + 2 * H), jnp.float32))
    xp = x_ext[:, :D]                            # projected node features (values)
    a_src = x_ext[:, D:D + H]                    # [N, H]
    a_dst = x_ext[:, D + H:D + 2 * H]            # [N, H]
    a_edge = pallas_linear(eattr_f, p["lin_edge_w"] @ head_matrix(p["att_edge"]),
                           jnp.zeros((1, H), jnp.float32))             # [E+N, H]

    # per-edge raw attention logits, scattered into a dense masked [H, Np, Np] tensor
    # (non-edges hold _NEG_BIG, so no separate mask tensor is streamed to the kernel)
    edge_logits = a_edge + a_src[src_f] + a_dst[dst_f]                 # [E+N, H]
    Np, tq, tk = _attn_tiles(N)
    elog = jnp.full((H, Np, Np), _NEG_BIG, jnp.float32).at[:, dst_f, src_f].set(edge_logits.T)
    # TODO(synk): duplicate (src,dst) edges overwrite each other here (PyG softmaxes each
    #             parallel edge separately), and the dense scatter itself still runs in
    #             XLA; moving it in-kernel would need scalar-prefetch of edge indices.

    v_h = jnp.pad(xp, ((0, Np - N), (0, 0))).reshape(Np, H, C).transpose(1, 0, 2)  # [H,Np,C]
    x_res = jnp.pad(x, ((0, Np - N), (0, 0)))

    out = pallas_gat_attention(elog, v_h, x_res, p["bias"][None, :], bn_scale, bn_shift,
                               tq=tq, tk=tk)
    return out[:N]


# ----------------------------------------------------------------------------
# Full GATe forward
# ----------------------------------------------------------------------------
def gate_forward(params, x, edge_index, edge_attr, edge_label_index, target_edge_attr,
                 *, n_heads, head_dim, num_gnn_layers):
    n_hidden = n_heads * head_dim

    target_edge_attr = pallas_linear(target_edge_attr, params["edge_emb_w"], params["edge_emb_b"])
    x = pallas_linear(x, params["node_emb_w"], params["node_emb_b"])
    edge_attr = pallas_linear(edge_attr, params["edge_emb_w"], params["edge_emb_b"])

    for i in range(num_gnn_layers):
        p = params["layers"][i]
        scale = p["bn_w"] / jnp.sqrt(p["bn_var"] + 1e-5)       # eval-mode BatchNorm
        shift = p["bn_b"] - p["bn_mean"] * scale
        # (x + relu(bn(conv(x)))) / 2 is fully fused into the attention kernel epilogue
        x = gat_conv(x, edge_index, edge_attr, p, n_heads, head_dim,
                     scale[None, :], shift[None, :])
        # edge_updates=False -> no edge MLP update

    gathered = x[edge_label_index.T]                            # [T, 2, n_hidden]
    xg = jnp.maximum(gathered.reshape(-1, 2 * n_hidden), 0.0)   # relu
    feat = jnp.concatenate([xg, target_edge_attr], axis=1)      # [T, 3*n_hidden]
    # final_dropout only active in train mode -> identity here
    return pallas_mlp_head(feat, params["mlp1_w"], params["mlp1_b"],
                           params["mlp2_w"], params["mlp2_b"],
                           params["mlp3_w"], params["mlp3_b"])


# ----------------------------------------------------------------------------
# Deterministic parameter init
# ----------------------------------------------------------------------------
def _lin_init(key, fin, fout):
    kw, kb = jax.random.split(key)
    w = jax.random.normal(kw, (fin, fout), jnp.float32) / jnp.sqrt(jnp.float32(fin))
    b = jax.random.normal(kb, (1, fout), jnp.float32) * 0.01
    return w, b


def init_params(key, num_features, edge_dim, n_hidden, n_heads, num_gnn_layers, n_classes):
    head_dim = n_hidden // n_heads
    keys = jax.random.split(key, 8 + num_gnn_layers)
    node_w, node_b = _lin_init(keys[0], num_features, n_hidden)
    edge_w, edge_b = _lin_init(keys[1], edge_dim, n_hidden)
    m1w, m1b = _lin_init(keys[2], 3 * n_hidden, 50)
    m2w, m2b = _lin_init(keys[3], 50, 25)
    m3w, m3b = _lin_init(keys[4], 25, n_classes)

    layers = []
    for i in range(num_gnn_layers):
        lk = jax.random.split(keys[8 + i], 8)
        lin_w, _ = _lin_init(lk[0], n_hidden, n_heads * head_dim)
        lin_edge_w, _ = _lin_init(lk[1], n_hidden, n_heads * head_dim)
        layers.append(dict(
            lin_w=lin_w,
            lin_edge_w=lin_edge_w,
            att_src=jax.random.normal(lk[2], (1, n_heads, head_dim), jnp.float32) * 0.3,
            att_dst=jax.random.normal(lk[3], (1, n_heads, head_dim), jnp.float32) * 0.3,
            att_edge=jax.random.normal(lk[4], (1, n_heads, head_dim), jnp.float32) * 0.3,
            bias=jax.random.normal(lk[5], (n_hidden,), jnp.float32) * 0.01,
            bn_w=1.0 + 0.05 * jax.random.normal(lk[6], (n_hidden,), jnp.float32),
            bn_b=0.05 * jax.random.normal(lk[7], (n_hidden,), jnp.float32),
            bn_mean=jnp.zeros((n_hidden,), jnp.float32),
            bn_var=jnp.ones((n_hidden,), jnp.float32),
        ))

    return dict(
        node_emb_w=node_w, node_emb_b=node_b,
        edge_emb_w=edge_w, edge_emb_b=edge_b,
        layers=layers,
        mlp1_w=m1w, mlp1_b=m1b,
        mlp2_w=m2w, mlp2_b=m2b,
        mlp3_w=m3w, mlp3_b=m3b,
    )


# ----------------------------------------------------------------------------
# Main
# ----------------------------------------------------------------------------
if __name__ == "__main__":
    num_features, edge_dim = 8, 6
    n_hidden, n_heads, num_gnn_layers, n_classes = 32, 4, 2, 2
    head_dim = n_hidden // n_heads
    N, T = 16, 8  # nodes, target edges

    key = jax.random.PRNGKey(0)
    k1, k2, k3, k4 = jax.random.split(key, 4)

    x = jax.random.normal(k1, (N, num_features), jnp.float32)

    # deterministic unique directed edges, no self-loops
    base = jnp.arange(N, dtype=jnp.int32)
    src = jnp.concatenate([base, base])
    dst = jnp.concatenate([(base + 1) % N, (base + 5) % N])
    edge_index = jnp.stack([src, dst])                                  # [2, E], E=32
    edge_attr = jax.random.normal(k2, (src.shape[0], edge_dim), jnp.float32)

    tsrc = jnp.arange(T, dtype=jnp.int32) % N
    tdst = (jnp.arange(T, dtype=jnp.int32) + 3) % N
    edge_label_index = jnp.stack([tsrc, tdst])                          # [2, T]
    target_edge_attr = jax.random.normal(k3, (T, edge_dim), jnp.float32)

    params = init_params(k4, num_features, edge_dim, n_hidden, n_heads,
                         num_gnn_layers, n_classes)

    out = gate_forward(params, x, edge_index, edge_attr, edge_label_index,
                       target_edge_attr, n_heads=n_heads, head_dim=head_dim,
                       num_gnn_layers=num_gnn_layers)
    jax.block_until_ready(out)
    assert out.shape == (T, n_classes), out.shape
    assert bool(jnp.all(jnp.isfinite(out)))
    print("KERNEL_OK")
</pallas_src>

<mosaic_0001>
module attributes {stable_mosaic.version = 11 : i64} {
  func.func @_linear_kernel(%arg0: i32, %arg1: memref<8x6xf32, #tpu.memory_space<vmem>>, %arg2: memref<6x32xf32, #tpu.memory_space<vmem>>, %arg3: memref<1x32xf32, #tpu.memory_space<vmem>>, %arg4: memref<8x32xf32, #tpu.memory_space<vmem>>) attributes {dimension_semantics = [#tpu.dimension_semantics<parallel>], iteration_bounds = array<i64: 1>, scalar_prefetch = 0 : i64, scratch_operands = 0 : i64, tpu.core_type = #tpu.core_type<tc>, window_params = [{transform_indices = @transform_0, window_bounds = array<i64: 8, 6>}, {pipeline_mode = #tpu.pipeline_mode<synchronous>, transform_indices = @transform_1, window_bounds = array<i64: 6, 32>}, {pipeline_mode = #tpu.pipeline_mode<synchronous>, transform_indices = @transform_2, window_bounds = array<i64: 1, 32>}, {transform_indices = @transform_3, window_bounds = array<i64: 8, 32>}]} {
    %c0 = arith.constant 0 : index
    %c0_0 = arith.constant 0 : index
    %0 = vector.load %arg1[%c0, %c0_0] : memref<8x6xf32, #tpu.memory_space<vmem>>, vector<8x6xf32>
    %c0_1 = arith.constant 0 : index
    %c0_2 = arith.constant 0 : index
    %1 = vector.load %arg2[%c0_1, %c0_2] : memref<6x32xf32, #tpu.memory_space<vmem>>, vector<6x32xf32>
    %cst = arith.constant dense<0.000000e+00> : vector<8x32xf32>
    %2 = tpu.matmul %0, %1, %cst {dimension_numbers = #tpu.dot_dimension_numbers<[1], [0], [0], [1], [0, 0, 1, 1], [], []>} : vector<8x6xf32>, vector<6x32xf32>, vector<8x32xf32> -> vector<8x32xf32>
    %c0_3 = arith.constant 0 : index
    %c0_4 = arith.constant 0 : index
    %3 = vector.load %arg3[%c0_3, %c0_4] : memref<1x32xf32, #tpu.memory_space<vmem>>, vector<1x32xf32>
    %4 = vector.broadcast %3 : vector<1x32xf32> to vector<8x32xf32>
    %5 = arith.addf %2, %4 : vector<8x32xf32>
    %c0_5 = arith.constant 0 : index
    %c0_6 = arith.constant 0 : index
    %6 = vector.load %arg4[%c0_5, %c0_6] : memref<8x32xf32, #tpu.memory_space<vmem>>, vector<8x32xf32>
    tpu.vector_store %arg4[%c0_5, %c0_6], %5 {strides = array<i32>} : memref<8x32xf32, #tpu.memory_space<vmem>>, vector<8x32xf32>,
    return
  }
  func.func @transform_0(%arg0: i32) -> (i32, i32) {
    %c0_i32 = arith.constant 0 : i32
    %c0_i32_0 = arith.constant 0 : i32
    return %arg0, %c0_i32 : i32, i32
  }
  func.func @transform_1(%arg0: i32) -> (i32, i32) {
    %c0_i32 = arith.constant 0 : i32
    %c0_i32_0 = arith.constant 0 : i32
    %c0_i32_1 = arith.constant 0 : i32
    return %c0_i32, %c0_i32_0 : i32, i32
  }
  func.func @transform_2(%arg0: i32) -> (i32, i32) {
    %c0_i32 = arith.constant 0 : i32
    %c0_i32_0 = arith.constant 0 : i32
    %c0_i32_1 = arith.constant 0 : i32
    return %c0_i32, %c0_i32_0 : i32, i32
  }
  func.func @transform_3(%arg0: i32) -> (i32, i32) {
    %c0_i32 = arith.constant 0 : i32
    %c0_i32_0 = arith.constant 0 : i32
    return %arg0, %c0_i32 : i32, i32
  }
}

</mosaic_0001>

<llo_original>
// kernel: tpu_custom_call.1
$region0: #{tpu_custom_call.1}
  #allocation0 [shape = 'u32[]', space=smem, size = 0x4, offset = 0x4, fixed_abs, tag = 'smem constant byte address 0x4 - core index']
  #allocation1 [shape = 'u32[144,128]{1,0:T(1,128)}', space=vmem, size = 0x12000, scoped, tag = 'internal scratch']
  %s0 = inlined_call_operand.hbm [shape: f32[8,6], index: 0, kind: input, shape index: {}]
  %s1 = inlined_call_operand.hbm [shape: f32[6,32], index: 1, kind: input, shape index: {}]
  %s2 = inlined_call_operand.vmem [shape: f32[1,32], index: 2, kind: input, shape index: {}]
  %s3 = inlined_call_operand.hbm [shape: f32[8,32], index: 3, kind: output, shape index: {}]
  %s4 = sld [smem:[#allocation0]]
  $region30: #{tpu_custom_call.1} parent=0
    _
  %s6 = ssub.s32 1, %s4
  %s7 = scalar_select 0, %s6, %s4
  $region1: #{tpu_custom_call.1} parent=0
    #allocation2 [shape = 'u8[4096]{0}', space=vmem, size = 0x1000, scoped, tag = 'input window, operand 0, single buffered']
    #allocation3 [shape = 's32[1]{0}', space=sflag, size = 0x4, scoped, tag = 'scoped memory for tpu_custom_call.1']
    #allocation4 [shape = 's32[1]{0}', space=sflag, size = 0x4, scoped, tag = 'scoped memory for tpu_custom_call.1']
    #allocation5 [shape = 'u8[4096]{0}', space=vmem, size = 0x1000, scoped, tag = 'input window, operand 1, single buffered']
    #allocation6 [shape = 's32[1]{0}', space=sflag, size = 0x4, scoped, tag = 'scoped memory for tpu_custom_call.1']
    #allocation7 [shape = 'u8[4096]{0}', space=vmem, size = 0x1000, scoped, tag = 'output window, operand 0, single buffered']
    %8 = vsyncpa [#allocation3], 0
    %9 = vsyncpa [#allocation6], 0
    %10 = vsyncpa [#allocation4], 0
    // Predicated region
    $region2: #{tpu_custom_call.1} parent=1 // pred_check
      _
    $region3: #{tpu_custom_call.1} parent=1 // pred_check_branch
      %12 = sbr.rel (0) target = $region5
    $region4: #{tpu_custom_call.1} parent=1 // pred_region
      %s14 = ssub.s32 128, 128
      %15 = vsyncadd [#allocation3], %s14
      %s17 = sshll.u32 [#allocation2], 4
      %s18 = int_to_ptr.vmem [resolvable:$true] %s17
      %20 = dma.hbm_to_vmem [thread:$0]  %s0, 128, %s18, [#allocation3]
    $region5: #{tpu_custom_call.1} parent=1 // pred_fallthru
      _
    // Predicated region
    $region6: #{tpu_custom_call.1} parent=1 // pred_check
      _
    $region7: #{tpu_custom_call.1} parent=1 // pred_check_branch
      %22 = sbr.rel (0) target = $region9
    $region8: #{tpu_custom_call.1} parent=1 // pred_region
      %s24 = ssub.s32 128, 128
      %25 = vsyncadd [#allocation6], %s24
      %s27 = sshll.u32 [#allocation5], 4
      %s28 = int_to_ptr.vmem [resolvable:$true] %s27
      %30 = dma.hbm_to_vmem [thread:$0]  %s1, 128, %s28, [#allocation6]
    $region9: #{tpu_custom_call.1} parent=1 // pred_fallthru
      _
    // Predicated region
    $region10: #{tpu_custom_call.1} parent=1 // pred_check
      _
    $region11: #{tpu_custom_call.1} parent=1 // pred_check_branch
      %32 = sbr.rel (0) target = $region13
    $region12: #{tpu_custom_call.1} parent=1 // pred_region
      _
    $region13: #{tpu_custom_call.1} parent=1 // pred_fallthru
      _
    // Predicated region
    $region14: #{tpu_custom_call.1} parent=1 // pred_check
      _
    $region15: #{tpu_custom_call.1} parent=1 // pred_check_branch
      %34 = sbr.rel (0) target = $region17
    $region16: #{tpu_custom_call.1} parent=1 // pred_region
      %35 = dma.done [#allocation3], 128
    $region17: #{tpu_custom_call.1} parent=1 // pred_fallthru
      _
    // Predicated region
    $region18: #{tpu_custom_call.1} parent=1 // pred_check
      _
    $region19: #{tpu_custom_call.1} parent=1 // pred_check_branch
      %37 = sbr.rel (0) target = $region21
    $region20: #{tpu_custom_call.1} parent=1 // pred_region
      %38 = dma.done [#allocation6], 128
    $region21: #{tpu_custom_call.1} parent=1 // pred_fallthru
      _
    %v39 = vld [vmem:[#allocation2] sm:$0xff]
    %v40 = vld [vmem:[#allocation5] sm:$0x3f]
    %v41 = vld [vmem:[%s2] sm:$0x1]
    %v43 = vlaneseq
    %v44 = vshrl.u32 %v43, 7
    %v45 = vsub.s32 0, %v44
    %v46 = vrot.slane %v41, %v45
    %vm48 = vcmask 48128
    %v50 = vsel %vm48, %v39, 0
    %vm52 = vcmask 1045504
    %v54 = vsel %vm52, %v40, 0
    %56 = vmatprep.subr.mxu0 0.0
    %57 = vmatpush1.msra.mxu0 %v54
    %58 = vmatprep.subr.mxu0 0.0
    %59 = vmatpush1.msra.mxu0 0.0
    %60 = vmatprep.subr.mxu0 0.0
    %61 = vmatpush1.msra.mxu0 0.0
    %62 = vmatprep.subr.mxu0 0.0
    %63 = vmatpush1.msra.mxu0 0.0
    %64 = vmatprep.subr.mxu0 0.0
    %65 = vmatpush1.msra.mxu0 0.0
    %66 = vmatprep.subr.mxu0 0.0
    %67 = vmatpush1.msra.mxu0 0.0
    %68 = vmatprep.subr.mxu0 0.0
    %69 = vmatpush1.msra.mxu0 0.0
    %70 = vmatprep.subr.mxu0 0.0
    %71 = vmatpush1.msra.mxu0 0.0
    %72 = vmatprep.subr.mxu0 0.0
    %73 = vmatpush1.msra.mxu0 0.0
    %74 = vmatprep.subr.mxu0 0.0
    %75 = vmatpush1.msra.mxu0 0.0
    %76 = vmatprep.subr.mxu0 0.0
    %77 = vmatpush1.msra.mxu0 0.0
    %78 = vmatprep.subr.mxu0 0.0
    %79 = vmatpush1.msra.mxu0 0.0
    %80 = vmatprep.subr.mxu0 0.0
    %81 = vmatpush1.msra.mxu0 0.0
    %82 = vmatprep.subr.mxu0 0.0
    %83 = vmatpush1.msra.mxu0 0.0
    %84 = vmatprep.subr.mxu0 0.0
    %85 = vmatpush1.msra.mxu0 0.0
    %86 = vmatprep.subr.mxu0 0.0
    %87 = vmatpush1.msra.mxu0 0.0
    %88 = vmatprep.subr.mxu0 0.0
    %89 = vmatpush1.msra.mxu0 0.0
    %90 = vmatprep.subr.mxu0 0.0
    %91 = vmatpush1.msra.mxu0 0.0
    %92 = vmatprep.subr.mxu0 0.0
    %93 = vmatpush1.msra.mxu0 0.0
    %94 = vmatprep.subr.mxu0 0.0
    %95 = vmatpush1.msra.mxu0 0.0
    %96 = vmatprep.subr.mxu0 0.0
    %97 = vmatpush1.msra.mxu0 0.0
    %98 = vmatprep.subr.mxu0 0.0
    %99 = vmatpush1.msra.mxu0 0.0
    %100 = vmatprep.subr.mxu0 0.0
    %101 = vmatpush1.msra.mxu0 0.0
    %102 = vmatprep.subr.mxu0 0.0
    %103 = vmatpush1.msra.mxu0 0.0
    %104 = vmatprep.subr.mxu0 0.0
    %105 = vmatpush1.msra.mxu0 0.0
    %106 = vmatprep.subr.mxu0 0.0
    %107 = vmatpush1.msra.mxu0 0.0
    %108 = vmatprep.subr.mxu0 0.0
    %109 = vmatpush1.msra.mxu0 0.0
    %110 = vmatprep.subr.mxu0 0.0
    %111 = vmatpush1.msra.mxu0 0.0
    %112 = vmatprep.subr.mxu0 0.0
    %113 = vmatpush1.msra.mxu0 0.0
    %114 = vmatprep.subr.mxu0 0.0
    %115 = vmatpush1.msra.mxu0 0.0
    %116 = vmatprep.subr.mxu0 0.0
    %117 = vmatpush1.msra.mxu0 0.0
    %118 = vmatprep.subr.mxu0 0.0
    %119 = vmatpush1.msra.mxu0 0.0
    %120 = vmatprep.mubr.f32.mxu0 0.0
    %121 = vmatmul.mubr.f32.gmra.mrb[0].mxu0 %v50
    %v122 = vpop.f32.mrb[0].mxu0
    %v123 = vadd.f32 %v46, %v122
    %v124 = vpop.f32.mrb[0].mxu0
    %125 = vdwg.mxu0
    %vm126 = vcmask 261120
    %127 = vst.msk [vmem:[#allocation7] sm:$0xff] %vm126, %v123
    // Predicated region
    $region22: #{tpu_custom_call.1} parent=1 // pred_check
      _
    $region23: #{tpu_custom_call.1} parent=1 // pred_check_branch
      %129 = sbr.rel (0) target = $region25
    $region24: #{tpu_custom_call.1} parent=1 // pred_region
      %s131 = ssub.s32 128, 128
      %132 = vsyncadd [#allocation4], %s131
      %s134 = sshll.u32 [#allocation7], 4
      %s135 = int_to_ptr.vmem [resolvable:$true] %s134
      %137 = dma.vmem_to_hbm [thread:$0]  %s135, 128, %s3, [#allocation4]
    $region25: #{tpu_custom_call.1} parent=1 // pred_fallthru
      _
    // Predicated region
    $region26: #{tpu_custom_call.1} parent=1 // pred_check
      _
    $region27: #{tpu_custom_call.1} parent=1 // pred_check_branch
      %139 = sbr.rel (0) target = $region29
    $region28: #{tpu_custom_call.1} parent=1 // pred_region
      %140 = dma.done [#allocation4], 128
    $region29: #{tpu_custom_call.1} parent=1 // pred_fallthru
      _
    %141 = vsyncpa [#allocation3], 1
    %142 = vsyncpa [#allocation6], 1
    %143 = vsyncpa [#allocation4], 1

</llo_original>
